<compile_context>
chip_gen: v7x
topology: tpu7x:2x2x1
jax: 0.10.0
libtpu: 0.0.40
codegen_flags: <defaults>
</compile_context>

<pallas_src>
import functools

import jax
import jax.numpy as jnp
from jax.experimental import pallas as pl
from jax.experimental.pallas import tpu as pltpu

# torch.finfo().eps (float32 eps) as a Python float -> becomes a jaxpr literal.
_F32_EPS = 1.1920928955078125e-07


def _elr_kernel(idx_ref, yhat_ref, tgt_ref, new_tgt_ref, loss_ref, *,
                momentum, inv_batch):
    """One batch row per grid step.

    idx_ref     : [B]       int32 scalar-prefetch (used only by the index_maps)
    yhat_ref    : [1, 1, C] logits row (native dtype)
    tgt_ref     : [1, 1, C] gathered target row  target[idx[i]]
    new_tgt_ref : [1, 1, C] updated target row (scattered back via index_map)
    loss_ref    : [1, 1, 1] resident accumulator for the mean log1p loss
    """
    del idx_ref  # only consumed inside the BlockSpec index_maps
    i = pl.program_id(0)

    @pl.when(i == 0)
    def _init():
        loss_ref[...] = jnp.zeros_like(loss_ref)

    y = yhat_ref[...].astype(jnp.float32)                       # (1, 1, C)

    # softmax(yhat, dim=-1), numerically stable
    m = jnp.max(y, axis=-1, keepdims=True)
    e = jnp.exp(y - m)
    prob = e / jnp.sum(e, axis=-1, keepdims=True)

    # clamp(prob, min=eps) (detach is a no-op in forward), then renormalize
    prob = jnp.maximum(prob, _F32_EPS)
    update = prob / jnp.sum(prob, axis=-1, keepdims=True)

    # EMA update of this target row
    new_t = momentum * tgt_ref[...].astype(jnp.float32) + (1.0 - momentum) * update
    new_tgt_ref[...] = new_t.astype(new_tgt_ref.dtype)

    # elr contribution: log1p(-(target[idx] * prob).sum(-1)), mean over batch.
    # NOTE: like the PyTorch module, no clamp on dot -> log1p(-1) would be -inf
    # for pathologically peaked probabilities.
    dot = jnp.sum(new_t * prob, axis=-1, keepdims=True)          # (1, 1, 1)
    loss_ref[...] += jnp.log1p(-dot)

    @pl.when(i == pl.num_programs(0) - 1)
    def _finish():
        loss_ref[...] = loss_ref[...] * inv_batch


def elr_loss(target, idx, yhat, momentum=0.7):
    """Functional ELRLoss.forward.

    Args:
      target: [train_sz, num_classes] float32 running-target buffer.
      idx:    [B] int32 indices into the target buffer.
      yhat:   [B, num_classes] logits (any float dtype).
    Returns:
      (elr_scalar, new_target) -- PyTorch mutates `target` in place; here the
      updated buffer is returned (aliased to the input inside the kernel).
    """
    B, C = yhat.shape
    train_sz = target.shape[0]

    # Leading unit dim so every block's last two dims equal the full array
    # dims (layout-safe on Mosaic); reshapes are free metadata ops.
    yhat3 = yhat.reshape(B, 1, C)
    tgt3 = target.reshape(train_sz, 1, C)

    grid_spec = pltpu.PrefetchScalarGridSpec(
        num_scalar_prefetch=1,
        grid=(B,),
        in_specs=[
            pl.BlockSpec((1, 1, C), lambda i, idx_ref: (i, 0, 0)),           # yhat row
            pl.BlockSpec((1, 1, C), lambda i, idx_ref: (idx_ref[i], 0, 0)),  # gather
        ],
        out_specs=(
            pl.BlockSpec((1, 1, C), lambda i, idx_ref: (idx_ref[i], 0, 0)),  # scatter
            pl.BlockSpec((1, 1, 1), lambda i, idx_ref: (0, 0, 0)),           # loss acc
        ),
    )

    new_tgt3, loss = pl.pallas_call(
        functools.partial(_elr_kernel, momentum=float(momentum),
                          inv_batch=1.0 / B),
        grid_spec=grid_spec,
        out_shape=(
            jax.ShapeDtypeStruct((train_sz, 1, C), target.dtype),  # updated buffer
            jax.ShapeDtypeStruct((1, 1, 1), jnp.float32),          # scalar loss
        ),
        # Call operands are (idx, yhat3, tgt3): alias tgt3 -> output 0 so the
        # scatter is effectively in place and untouched rows are preserved.
        input_output_aliases={2: 0},
        compiler_params=pltpu.CompilerParams(
            dimension_semantics=("arbitrary",)),   # sequential: loss accumulator
    )(idx.astype(jnp.int32), yhat3, tgt3)

    return loss[0, 0, 0], new_tgt3.reshape(train_sz, C)


def _elr_ref(target, idx, yhat, momentum=0.7):
    """Pure-JAX reference mirroring the PyTorch module, for verification."""
    prob = jax.nn.softmax(yhat.astype(jnp.float32), axis=-1)
    prob = jnp.maximum(prob, _F32_EPS)
    update = prob / jnp.sum(prob, axis=-1, keepdims=True)
    rows = momentum * target[idx] + (1.0 - momentum) * update
    new_target = target.at[idx].set(rows)
    elr = jnp.mean(jnp.log1p(-jnp.sum(rows * prob, axis=-1)))
    return elr, new_target


if __name__ == "__main__":
    train_sz, num_classes, batch = 64, 32, 8
    momentum = 0.7

    key = jax.random.PRNGKey(0)
    k1, k2, k3 = jax.random.split(key, 3)

    # Module registers zeros(train_sz, num_classes); warm it with one prior EMA
    # step so the gather/scatter path is non-trivial.
    target = jnp.zeros((train_sz, num_classes), jnp.float32)
    warm = jax.nn.softmax(jax.random.normal(k3, (train_sz, num_classes)), axis=-1)
    target = momentum * target + (1.0 - momentum) * warm

    idx = jax.random.permutation(k1, train_sz)[:batch].astype(jnp.int32)
    yhat = jax.random.normal(k2, (batch, num_classes), jnp.float32)

    # Reference first (uses the original, un-donated `target` buffer).
    elr_r, new_target_r = _elr_ref(target, idx, yhat, momentum=momentum)

    elr, new_target = elr_loss(target, idx, yhat, momentum=momentum)
    elr = jax.block_until_ready(elr)
    new_target = jax.block_until_ready(new_target)

    assert jnp.allclose(elr, elr_r, rtol=1e-5, atol=1e-6), (elr, elr_r)
    assert jnp.allclose(new_target, new_target_r, rtol=1e-5, atol=1e-6)

    print("KERNEL_OK")
</pallas_src>

<mosaic_0001>
module attributes {stable_mosaic.version = 11 : i64} {
  func.func @_elr_kernel(%arg0: i32, %arg1: memref<8xi32, #tpu.memory_space<smem>>, %arg2: memref<1x1x32xf32, #tpu.memory_space<vmem>>, %arg3: memref<1x1x32xf32, #tpu.memory_space<vmem>>, %arg4: memref<1x1x32xf32, #tpu.memory_space<vmem>>, %arg5: memref<1x1x1xf32, #tpu.memory_space<vmem>>) attributes {dimension_semantics = [#tpu.dimension_semantics<arbitrary>], iteration_bounds = array<i64: 8>, scalar_prefetch = 1 : i64, scratch_operands = 0 : i64, tpu.core_type = #tpu.core_type<tc>, window_params = [{transform_indices = @transform_0, window_bounds = array<i64: 1, 1, 32>}, {transform_indices = @transform_1, window_bounds = array<i64: 1, 1, 32>}, {transform_indices = @transform_2, window_bounds = array<i64: 1, 1, 32>}, {pipeline_mode = #tpu.pipeline_mode<synchronous>, transform_indices = @transform_3, window_bounds = array<i64: 1, 1, 1>}]} {
    %c0_i32 = arith.constant 0 : i32
    %0 = arith.cmpi eq, %arg0, %c0_i32 : i32
    %1 = arith.extui %0 : i1 to i32
    %c0_i32_0 = arith.constant 0 : i32
    %2 = arith.cmpi ne, %1, %c0_i32_0 : i32
    scf.if %2 {
      %cst_23 = arith.constant 0.000000e+00 : f32
      %38 = vector.broadcast %cst_23 : f32 to vector<1x1x1xf32>
      %c0_24 = arith.constant 0 : index
      %c0_25 = arith.constant 0 : index
      %c0_26 = arith.constant 0 : index
      %39 = vector.load %arg5[%c0_24, %c0_25, %c0_26] : memref<1x1x1xf32, #tpu.memory_space<vmem>>, vector<1x1x1xf32>
      tpu.vector_store %arg5[%c0_24, %c0_25, %c0_26], %38 {strides = array<i32>} : memref<1x1x1xf32, #tpu.memory_space<vmem>>, vector<1x1x1xf32>,
    } else {
    }
    %c0 = arith.constant 0 : index
    %c0_1 = arith.constant 0 : index
    %c0_2 = arith.constant 0 : index
    %3 = vector.load %arg2[%c0, %c0_1, %c0_2] : memref<1x1x32xf32, #tpu.memory_space<vmem>>, vector<1x1x32xf32>
    %cst = arith.constant dense<0xFF800000> : vector<1x1xf32>
    %4 = vector.multi_reduction <maximumf>, %3, %cst [2] : vector<1x1x32xf32> to vector<1x1xf32>
    %5 = vector.shape_cast %4 : vector<1x1xf32> to vector<1x1x1xf32>
    %6 = vector.broadcast %5 : vector<1x1x1xf32> to vector<1x1x32xf32>
    %7 = arith.subf %3, %6 : vector<1x1x32xf32>
    %8 = math.exp %7 : vector<1x1x32xf32>
    %cst_3 = arith.constant dense<0.000000e+00> : vector<1x1xf32>
    %9 = vector.multi_reduction <add>, %8, %cst_3 [2] : vector<1x1x32xf32> to vector<1x1xf32>
    %10 = vector.shape_cast %9 : vector<1x1xf32> to vector<1x1x1xf32>
    %11 = vector.broadcast %10 : vector<1x1x1xf32> to vector<1x1x32xf32>
    %12 = arith.divf %8, %11 : vector<1x1x32xf32>
    %cst_4 = arith.constant 1.1920929E-7 : f32
    %13 = vector.broadcast %cst_4 : f32 to vector<1x1x32xf32>
    %14 = arith.maximumf %12, %13 : vector<1x1x32xf32>
    %cst_5 = arith.constant dense<0.000000e+00> : vector<1x1xf32>
    %15 = vector.multi_reduction <add>, %14, %cst_5 [2] : vector<1x1x32xf32> to vector<1x1xf32>
    %16 = vector.shape_cast %15 : vector<1x1xf32> to vector<1x1x1xf32>
    %17 = vector.broadcast %16 : vector<1x1x1xf32> to vector<1x1x32xf32>
    %18 = arith.divf %14, %17 : vector<1x1x32xf32>
    %c0_6 = arith.constant 0 : index
    %c0_7 = arith.constant 0 : index
    %c0_8 = arith.constant 0 : index
    %19 = vector.load %arg3[%c0_6, %c0_7, %c0_8] : memref<1x1x32xf32, #tpu.memory_space<vmem>>, vector<1x1x32xf32>
    %cst_9 = arith.constant 0.699999988 : f32
    %20 = vector.broadcast %cst_9 : f32 to vector<1x1x32xf32>
    %21 = arith.mulf %20, %19 : vector<1x1x32xf32>
    %cst_10 = arith.constant 3.000000e-01 : f32
    %22 = vector.broadcast %cst_10 : f32 to vector<1x1x32xf32>
    %23 = arith.mulf %22, %18 : vector<1x1x32xf32>
    %24 = arith.addf %21, %23 : vector<1x1x32xf32>
    %c0_11 = arith.constant 0 : index
    %c0_12 = arith.constant 0 : index
    %c0_13 = arith.constant 0 : index
    %25 = vector.load %arg4[%c0_11, %c0_12, %c0_13] : memref<1x1x32xf32, #tpu.memory_space<vmem>>, vector<1x1x32xf32>
    tpu.vector_store %arg4[%c0_11, %c0_12, %c0_13], %24 {strides = array<i32>} : memref<1x1x32xf32, #tpu.memory_space<vmem>>, vector<1x1x32xf32>,
    %26 = arith.mulf %24, %14 : vector<1x1x32xf32>
    %cst_14 = arith.constant dense<0.000000e+00> : vector<1x1xf32>
    %27 = vector.multi_reduction <add>, %26, %cst_14 [2] : vector<1x1x32xf32> to vector<1x1xf32>
    %28 = vector.shape_cast %27 : vector<1x1xf32> to vector<1x1x1xf32>
    %c0_15 = arith.constant 0 : index
    %c0_16 = arith.constant 0 : index
    %c0_17 = arith.constant 0 : index
    %29 = vector.load %arg5[%c0_15, %c0_16, %c0_17] : memref<1x1x1xf32, #tpu.memory_space<vmem>>, vector<1x1x1xf32>
    %cst_18 = arith.constant 0.000000e+00 : f32
    %30 = vector.broadcast %cst_18 : f32 to vector<1x1x1xf32>
    %31 = arith.subf %30, %28 : vector<1x1x1xf32>
    %32 = math.log1p %31 : vector<1x1x1xf32>
    %33 = arith.addf %29, %32 : vector<1x1x1xf32>
    %c0_19 = arith.constant 0 : index
    %c0_20 = arith.constant 0 : index
    %c0_21 = arith.constant 0 : index
    %34 = vector.load %arg5[%c0_19, %c0_20, %c0_21] : memref<1x1x1xf32, #tpu.memory_space<vmem>>, vector<1x1x1xf32>
    tpu.vector_store %arg5[%c0_19, %c0_20, %c0_21], %33 {strides = array<i32>} : memref<1x1x1xf32, #tpu.memory_space<vmem>>, vector<1x1x1xf32>,
    %c7_i32 = arith.constant 7 : i32
    %35 = arith.cmpi eq, %arg0, %c7_i32 : i32
    %36 = arith.extui %35 : i1 to i32
    %c0_i32_22 = arith.constant 0 : i32
    %37 = arith.cmpi ne, %36, %c0_i32_22 : i32
    scf.if %37 {
      %c0_23 = arith.constant 0 : index
      %c0_24 = arith.constant 0 : index
      %c0_25 = arith.constant 0 : index
      %38 = vector.load %arg5[%c0_23, %c0_24, %c0_25] : memref<1x1x1xf32, #tpu.memory_space<vmem>>, vector<1x1x1xf32>
      %cst_26 = arith.constant 1.250000e-01 : f32
      %39 = vector.broadcast %cst_26 : f32 to vector<1x1x1xf32>
      %40 = arith.mulf %38, %39 : vector<1x1x1xf32>
      %c0_27 = arith.constant 0 : index
      %c0_28 = arith.constant 0 : index
      %c0_29 = arith.constant 0 : index
      %41 = vector.load %arg5[%c0_27, %c0_28, %c0_29] : memref<1x1x1xf32, #tpu.memory_space<vmem>>, vector<1x1x1xf32>
      tpu.vector_store %arg5[%c0_27, %c0_28, %c0_29], %40 {strides = array<i32>} : memref<1x1x1xf32, #tpu.memory_space<vmem>>, vector<1x1x1xf32>,
    } else {
    }
    return
  }
  func.func @transform_0(%arg0: i32, %arg1: memref<8xi32, #tpu.memory_space<smem>>) -> (i32, i32, i32) {
    %c0_i32 = arith.constant 0 : i32
    %c0_i32_0 = arith.constant 0 : i32
    %c0_i32_1 = arith.constant 0 : i32
    return %arg0, %c0_i32, %c0_i32_0 : i32, i32, i32
  }
  func.func @transform_1(%arg0: i32, %arg1: memref<8xi32, #tpu.memory_space<smem>>) -> (i32, i32, i32) {
    %0 = arith.index_cast %arg0 : i32 to index
    %1 = memref.load %arg1[%0] : memref<8xi32, #tpu.memory_space<smem>>
    %c0_i32 = arith.constant 0 : i32
    %c0_i32_0 = arith.constant 0 : i32
    %c0_i32_1 = arith.constant 0 : i32
    return %1, %c0_i32, %c0_i32_0 : i32, i32, i32
  }
  func.func @transform_2(%arg0: i32, %arg1: memref<8xi32, #tpu.memory_space<smem>>) -> (i32, i32, i32) {
    %0 = arith.index_cast %arg0 : i32 to index
    %1 = memref.load %arg1[%0] : memref<8xi32, #tpu.memory_space<smem>>
    %c0_i32 = arith.constant 0 : i32
    %c0_i32_0 = arith.constant 0 : i32
    %c0_i32_1 = arith.constant 0 : i32
    return %1, %c0_i32, %c0_i32_0 : i32, i32, i32
  }
  func.func @transform_3(%arg0: i32, %arg1: memref<8xi32, #tpu.memory_space<smem>>) -> (i32, i32, i32) {
    %c0_i32 = arith.constant 0 : i32
    %c0_i32_0 = arith.constant 0 : i32
    %c0_i32_1 = arith.constant 0 : i32
    %c0_i32_2 = arith.constant 0 : i32
    return %c0_i32, %c0_i32_0, %c0_i32_1 : i32, i32, i32
  }
}

</mosaic_0001>

<llo_original>
// kernel: tpu_custom_call.1
$region0: #{tpu_custom_call.1}
  #allocation0 [shape = 'u32[]', space=smem, size = 0x4, offset = 0x4, fixed_abs, tag = 'smem constant byte address 0x4 - core index']
  #allocation1 [shape = 'u32[144,128]{1,0:T(1,128)}', space=vmem, size = 0x12000, scoped, tag = 'internal scratch']
  #allocation2 [shape = 's32[1]{0}', space=sflag, size = 0x4, scoped, tag = 'scoped memory for tpu_custom_call.1']
  #allocation3 [shape = 'u8[512]{0}', space=smem, size = 0x200, scoped, tag = 'prefetched SMEM operand 0']
  %s0 = inlined_call_operand.vmem [shape: s32[8], index: 0, kind: input, shape index: {}]
  %s1 = inlined_call_operand.vmem [shape: f32[8,1,32], index: 1, kind: input, shape index: {}]
  %s2 = inlined_call_operand.vmem [shape: f32[64,1,32], index: 2, kind: input, shape index: {}, may-alias: {2,3}]
  %s3 = inlined_call_operand.vmem [shape: f32[64,1,32], index: 3, kind: output, shape index: {0}, may-alias: {2,3}]
  %s4 = inlined_call_operand.hbm [shape: f32[1,1,1], index: 4, kind: output, shape index: {1}]
  %5 = xla_tuple %s3, %s4
  %s6 = sld [smem:[#allocation0]]
  $region57: #{tpu_custom_call.1} parent=0
    _
  %s8 = ssub.s32 1, %s6
  %s9 = scalar_select 0, %s8, %s6
  %s10 = sshll.u32 %s0, 4
  %s11 = int_to_ptr.vmem [resolvable:$true] %s10
  %13 = dma.vmem_to_smem %s11, 16, [#allocation3], [#allocation2]
  %14 = dma.done [#allocation2], 16
  %15 = sfence
  $region1: #{tpu_custom_call.1} parent=0
    #allocation4 [shape = 'u8[512]{0}', space=vmem, size = 0x400, scoped, tag = 'output window, operand 1, single buffered']
    #allocation5 [shape = 's32[2]{0}', space=sflag, size = 0x8, scoped, tag = 'scoped memory for tpu_custom_call.1']
    %16 = vsyncpa [#allocation5], 0
    loop: start=0, step=1, limit=10
    $region2: #{tpu_custom_call.1} parent=1 // loop_pre_header
      _
    $region3: #{tpu_custom_call.1} parent=1 // loop_header
      %s18 = sphi 0, %s22
      %p19 = scmp.ge.s32.totalorder %s18, 10
      %s28 = sphi 0, %s30
      %s31 = sphi 0, %s28
      %s32 = sphi 0, %s31
      %s48 = sphi 0, %s32
      %s56 = sphi 0, %s58
      %s59 = sphi 0, %s56
      %s60 = sphi 0, %s59
      %s76 = sphi 0, %s60
      %s84 = sphi 0, %s86
      %s87 = sphi 0, %s84
      %s88 = sphi 0, %s87
      %s104 = sphi 0, %s88
      %s108 = sphi 0, %s108
      %s110 = sphi 0, %s108
      %s111 = sphi 0, %s110
      %s125 = sphi 0, %s111
    $region4: #{tpu_custom_call.1} parent=1 // loop_header_branch
      %21 = sbr.rel (%p19) target = $region8
    $region5: #{tpu_custom_call.1} parent=1 // loop_body
      %s23 = ssub.s32 %s18, 1
      %s24 = ssub.s32 %s18, 2
      %s25 = sadd.s32 %s18, 1
      %s26 = ssub.s32 %s18, %s25
      %p27 = scmp.eq.s32.totalorder %s26, 0
      %s29 = sadd.s32 %s28, 1
      %s30 = scalar_select %p27, %s28, %s29
      %p33 = pneg %p27
      %p34 = scmp.eq.s32.totalorder %s18, 7
      %p35 = por %p33, %p34
      %p36 = scmp.ne.s32.totalorder %s28, %s31
      %p37 = scmp.eq.s32.totalorder %s18, 0
      %p38 = por %p36, %p37
      %p39 = scmp.ne.s32.totalorder %s28, %s31
      %p40 = scmp.eq.s32.totalorder %s23, 7
      %p41 = por %p39, %p40
      %p42 = scmp.ne.s32.totalorder %s31, %s32
      %p43 = scmp.eq.s32.totalorder %s23, 0
      %p44 = por %p42, %p43
      %p45 = scmp.ne.s32.totalorder %s31, %s32
      %p46 = scmp.eq.s32.totalorder %s24, 7
      %p47 = por %p45, %p46
      %p49 = scmp.ne.s32.totalorder %s32, %s48
      %p50 = scmp.eq.s32.totalorder %s24, 0
      %p51 = por %p49, %p50
      %s52 = sld [smem:[#allocation3 + %s18]]
      %s53 = sld [smem:[#allocation3 + %s25]]
      %s54 = ssub.s32 %s52, %s53
      %p55 = scmp.eq.s32.totalorder %s54, 0
      %s57 = sadd.s32 %s56, 1
      %s58 = scalar_select %p55, %s56, %s57
      %p61 = pneg %p55
      %p62 = scmp.eq.s32.totalorder %s18, 7
      %p63 = por %p61, %p62
      %p64 = scmp.ne.s32.totalorder %s56, %s59
      %p65 = scmp.eq.s32.totalorder %s18, 0
      %p66 = por %p64, %p65
      %p67 = scmp.ne.s32.totalorder %s56, %s59
      %p68 = scmp.eq.s32.totalorder %s23, 7
      %p69 = por %p67, %p68
      %p70 = scmp.ne.s32.totalorder %s59, %s60
      %p71 = scmp.eq.s32.totalorder %s23, 0
      %p72 = por %p70, %p71
      %p73 = scmp.ne.s32.totalorder %s59, %s60
      %p74 = scmp.eq.s32.totalorder %s24, 7
      %p75 = por %p73, %p74
      %p77 = scmp.ne.s32.totalorder %s60, %s76
      %p78 = scmp.eq.s32.totalorder %s24, 0
      %p79 = por %p77, %p78
      %s80 = sld [smem:[#allocation3 + %s18]]
      %s81 = sld [smem:[#allocation3 + %s25]]
      %s82 = ssub.s32 %s80, %s81
      %p83 = scmp.eq.s32.totalorder %s82, 0
      %s85 = sadd.s32 %s84, 1
      %s86 = scalar_select %p83, %s84, %s85
      %p89 = pneg %p83
      %p90 = scmp.eq.s32.totalorder %s18, 7
      %p91 = por %p89, %p90
      %p92 = scmp.ne.s32.totalorder %s84, %s87
      %p93 = scmp.eq.s32.totalorder %s18, 0
      %p94 = por %p92, %p93
      %p95 = scmp.ne.s32.totalorder %s84, %s87
      %p96 = scmp.eq.s32.totalorder %s23, 7
      %p97 = por %p95, %p96
      %p98 = scmp.ne.s32.totalorder %s87, %s88
      %p99 = scmp.eq.s32.totalorder %s23, 0
      %p100 = por %p98, %p99
      %p101 = scmp.ne.s32.totalorder %s87, %s88
      %p102 = scmp.eq.s32.totalorder %s24, 7
      %p103 = por %p101, %p102
      %p105 = scmp.ne.s32.totalorder %s88, %s104
      %p106 = scmp.eq.s32.totalorder %s24, 0
      %p107 = por %p105, %p106
      %s109 = sadd.s32 %s108, 1
      %p112 = scmp.eq.s32.totalorder %s18, 7
      %p113 = scmp.ne.s32.totalorder %s108, %s110
      %p114 = scmp.eq.s32.totalorder %s18, 0
      %p115 = por %p113, %p114
      %p116 = scmp.ne.s32.totalorder %s108, %s110
      %p117 = scmp.eq.s32.totalorder %s23, 7
      %p118 = por %p116, %p117
      %p119 = scmp.ne.s32.totalorder %s110, %s111
      %p120 = scmp.eq.s32.totalorder %s23, 0
      %p121 = por %p119, %p120
      %p122 = scmp.ne.s32.totalorder %s110, %s111
      %p123 = scmp.eq.s32.totalorder %s24, 7
      %p124 = por %p122, %p123
      %p126 = scmp.ne.s32.totalorder %s111, %s125
      %p127 = scmp.eq.s32.totalorder %s24, 0
      %p128 = por %p126, %p127
      %p129 = scmp.le.s32.totalorder 1, %s18
      %p130 = scmp.lt.s32.totalorder %s18, 9
      %p131 = pnand %p129, %p130
      %p132 = pneg %p131
      // Predicated region
      $region9: #{tpu_custom_call.1} parent=5 // pred_check
        _
      $region10: #{tpu_custom_call.1} parent=5 // pred_check_branch
        %134 = sbr.rel (%p131) target = $region12
      $region11: #{tpu_custom_call.1} parent=5 // pred_region
        %s135 = ssub.s32 %s18, 1
      $region12: #{tpu_custom_call.1} parent=5 // pred_fallthru
        _
      %p136 = scmp.lt.s32.totalorder %s18, 8
      // Predicated region
      $region13: #{tpu_custom_call.1} parent=5 // pred_check
        %p137 = pneg %p136
      $region14: #{tpu_custom_call.1} parent=5 // pred_check_branch
        %139 = sbr.rel (%p137) target = $region16
      $region15: #{tpu_custom_call.1} parent=5 // pred_region
        // Predicated region
        $region17: #{tpu_custom_call.1} parent=15 // pred_check
          %p140 = pneg %p38
        $region18: #{tpu_custom_call.1} parent=15 // pred_check_branch
          %142 = sbr.rel (%p140) target = $region20
        $region19: #{tpu_custom_call.1} parent=15 // pred_region
          %p143 = scmp.lt.s32.totalorder %s18, 7
          %s144 = scalar_select %p143, %s18, 7
          %s145 = scalar_lea.vmem %s1, %s144
        $region20: #{tpu_custom_call.1} parent=15 // pred_fallthru
          _
        // Predicated region
        $region21: #{tpu_custom_call.1} parent=15 // pred_check
          %p146 = pneg %p66
        $region22: #{tpu_custom_call.1} parent=15 // pred_check_branch
          %148 = sbr.rel (%p146) target = $region24
        $region23: #{tpu_custom_call.1} parent=15 // pred_region
          %s149 = sld [smem:[#allocation3 + %s18]]
          %p150 = scmp.lt.s32.totalorder %s149, 63
          %s151 = scalar_select %p150, %s149, 63
          %s152 = scalar_lea.vmem %s2, %s151
          %s153 = sld [smem:[#allocation3 + %s18]]
        $region24: #{tpu_custom_call.1} parent=15 // pred_fallthru
          _
      $region16: #{tpu_custom_call.1} parent=5 // pred_fallthru
        _
      %p154 = scmp.le.s32.totalorder 1, %s18
      %p155 = scmp.lt.s32.totalorder %s18, 9
      %p156 = pnand %p154, %p155
      %p157 = pneg %p156
      // Predicated region
      $region25: #{tpu_custom_call.1} parent=5 // pred_check
        _
      $region26: #{tpu_custom_call.1} parent=5 // pred_check_branch
        %159 = sbr.rel (%p156) target = $region28
      $region27: #{tpu_custom_call.1} parent=5 // pred_region
        %s160 = ssub.s32 %s18, 1
        %p161 = scmp.lt.s32.totalorder %s23, 7
        %s162 = scalar_select %p161, %s23, 7
        %s163 = scalar_lea.vmem %s1, %s162
        %p164 = pneg %p44
        %p165 = pneg %p41
        %s166 = sld [smem:[#allocation3 + %s23]]
        %p167 = scmp.lt.s32.totalorder %s166, 63
        %s168 = scalar_select %p167, %s166, 63
        %s169 = scalar_lea.vmem %s2, %s168
        %p170 = pneg %p72
        %p171 = pneg %p69
        %p172 = pneg %p100
        %p173 = pneg %p97
        %s174 = sld [smem:[#allocation3 + %s23]]
        %p175 = scmp.lt.s32.totalorder %s174, 63
        %s176 = scalar_select %p175, %s174, 63
        %s177 = scalar_lea.vmem %s3, %s176
        %p178 = pneg %p121
        %p179 = pneg %p118
        %p180 = scmp.lt.s32.totalorder %s23, 7
        %s181 = scalar_select %p180, %s23, 7
        %s182 = scalar_lea.vmem %s1, %s181
        %s183 = sld [smem:[#allocation3 + %s23]]
        %p184 = scmp.lt.s32.totalorder %s183, 63
        %s185 = scalar_select %p184, %s183, 63
        %s186 = scalar_lea.vmem %s2, %s185
        %s187 = sld [smem:[#allocation3 + %s23]]
        %s188 = sld [smem:[#allocation3 + %s23]]
        %p189 = scmp.lt.s32.totalorder %s188, 63
        %s190 = scalar_select %p189, %s188, 63
        %s191 = scalar_lea.vmem %s3, %s190
        %s192 = sld [smem:[#allocation3 + %s23]]
        %p193 = scmp.eq.s32.totalorder %s23, 0
        // Predicated region
        $region29: #{tpu_custom_call.1} parent=27 // pred_check
          %p194 = pneg %p193
        $region30: #{tpu_custom_call.1} parent=27 // pred_check_branch
          %196 = sbr.rel (%p194) target = $region32
        $region31: #{tpu_custom_call.1} parent=27 // pred_region
          %vm197 = vcmask 0
          %198 = vst.msk [vmem:[#allocation4] sm:$0x1] %vm197, 0.0
        $region32: #{tpu_custom_call.1} parent=27 // pred_fallthru
          _
        %v199 = vld [vmem:[%s182] sm:$0x1]
        %vm200 = vcmask 253952
        %v201 = vsel %vm200, %v199, -inf
        %202 = vmax.xlane.f32.xlu0 %v201
        %v203 = vpop.xlane.xlu0 %202
        %v204 = vsub.f32 %v199, %v203
        %v205 = vmul.f32 %v204, 1.442695
        %v206 = vpow.pop %v205
        %v207 = vsel %vm200, %v206, 0.0
        %208 = vadd.xlane.f32.xlu0 %v207
        %v209 = vpop.xlane.xlu0 %208
        %v210 = vrcp.pop %v209
        %v211 = vmul.f32 %v206, %v210
        %v212 = vmax.f32 %v211, 1.1920929e-07
        %v213 = vsel %vm200, %v212, 0.0
        %214 = vadd.xlane.f32.xlu0 %v213
        %v215 = vpop.xlane.xlu0 %214
        %v216 = vrcp.pop %v215
        %v217 = vmul.f32 %v212, %v216
        %v218 = vld [vmem:[%s186] sm:$0x1]
        %v219 = vmul.f32 %v218, 0.7
        %v220 = vmul.f32 %v217, 0.3
        %v221 = vadd.f32 %v219, %v220
        %222 = vst.msk [vmem:[%s191] sm:$0x1] %vm200, %v221
        %v223 = vmul.f32 %v221, %v212
        %v224 = vsel %vm200, %v223, 0.0
        %225 = vadd.xlane.f32.xlu0 %v224
        %v226 = vpop.xlane.xlu0 %225
        %v227 = vld [vmem:[#allocation4] sm:$0x1]
        %v228 = vsub.f32 0.0, %v226
        %v229 = vadd.f32 %v228, 1.0
        %v230 = vlog2.pop %v229
        %v231 = vmul.f32 %v230, 0.6931472
        %v232 = vmul.f32 -0.5, %v228
        %v233 = vadd.f32 %v232, 1.0
        %v234 = vmul.f32 %v233, %v228
        %v235 = vand.u32 2147483647, %v228
        %vm236 = vcmp.lt.f32.partialorder %v235, 0.0004427343
        %v237 = vsel %vm236, %v234, %v231
        %v238 = vadd.f32 %v227, %v237
        %vm239 = vcmask 0
        %240 = vst.msk [vmem:[#allocation4] sm:$0x1] %vm239, %v238
        %p241 = scmp.eq.s32.totalorder %s23, 7
        // Predicated region
        $region33: #{tpu_custom_call.1} parent=27 // pred_check
          %p242 = pneg %p241
        $region34: #{tpu_custom_call.1} parent=27 // pred_check_branch
          %244 = sbr.rel (%p242) target = $region36
        $region35: #{tpu_custom_call.1} parent=27 // pred_region
          %v245 = vld [vmem:[#allocation4] sm:$0x1]
          %v246 = vmul.f32 %v245, 0.125
          %247 = vst.msk [vmem:[#allocation4] sm:$0x1] %vm239, %v246
        $region36: #{tpu_custom_call.1} parent=27 // pred_fallthru
          _
        %s248 = sld [smem:[#allocation3 + %s23]]
        %p249 = scmp.lt.s32.totalorder %s248, 63
        %s250 = scalar_select %p249, %s248, 63
        %s251 = scalar_lea.vmem %s3, %s250
        // Predicated region
        $region37: #{tpu_custom_call.1} parent=27 // pred_check
          %p252 = pneg %p97
        $region38: #{tpu_custom_call.1} parent=27 // pred_check_branch
          %254 = sbr.rel (%p252) target = $region40
        $region39: #{tpu_custom_call.1} parent=27 // pred_region
          %s255 = sld [smem:[#allocation3 + %s23]]
        $region40: #{tpu_custom_call.1} parent=27 // pred_fallthru
          _
        // Predicated region
        $region41: #{tpu_custom_call.1} parent=27 // pred_check
          %p256 = pneg %p118
        $region42: #{tpu_custom_call.1} parent=27 // pred_check_branch
          %258 = sbr.rel (%p256) target = $region44
        $region43: #{tpu_custom_call.1} parent=27 // pred_region
          %s260 = ssub.s32 16, 16
          %261 = vsyncadd [#allocation5], %s260
          %s263 = sshll.u32 [#allocation4], 4
          %s264 = int_to_ptr.vmem [resolvable:$true] %s263
          %266 = dma.vmem_to_hbm [thread:$0]  %s264, 16, %s4, [#allocation5]
        $region44: #{tpu_custom_call.1} parent=27 // pred_fallthru
          _
        // Predicated region
        $region45: #{tpu_custom_call.1} parent=27 // pred_check
          %p267 = pneg %p118
        $region46: #{tpu_custom_call.1} parent=27 // pred_check_branch
          %269 = sbr.rel (%p267) target = $region48
        $region47: #{tpu_custom_call.1} parent=27 // pred_region
          %270 = dma.done [#allocation5], 16
        $region48: #{tpu_custom_call.1} parent=27 // pred_fallthru
          _
      $region28: #{tpu_custom_call.1} parent=5 // pred_fallthru
        _
      %p271 = scmp.le.s32.totalorder 2, %s18
      // Predicated region
      $region49: #{tpu_custom_call.1} parent=5 // pred_check
        %p272 = pneg %p271
      $region50: #{tpu_custom_call.1} parent=5 // pred_check_branch
        %274 = sbr.rel (%p272) target = $region52
      $region51: #{tpu_custom_call.1} parent=5 // pred_region
        %s275 = ssub.s32 %s18, 2
        // Predicated region
        $region53: #{tpu_custom_call.1} parent=51 // pred_check
          %p276 = pneg %p103
        $region54: #{tpu_custom_call.1} parent=51 // pred_check_branch
          %278 = sbr.rel (%p276) target = $region56
        $region55: #{tpu_custom_call.1} parent=51 // pred_region
          %s279 = sld [smem:[#allocation3 + %s24]]
          %p280 = scmp.lt.s32.totalorder %s279, 63
          %s281 = scalar_select %p280, %s279, 63
          %s282 = scalar_lea.vmem %s3, %s281
        $region56: #{tpu_custom_call.1} parent=51 // pred_fallthru
          _
      $region52: #{tpu_custom_call.1} parent=5 // pred_fallthru
        _
    $region6: #{tpu_custom_call.1} parent=1 // loop_footer
      %s22 = sadd.s32 1, %s18
    $region7: #{tpu_custom_call.1} parent=1 // loop_footer_branch
      %17 = sbr.rel target = $region3
    $region8: #{tpu_custom_call.1} parent=1 // loop_exit
      _
    %283 = vsyncpa [#allocation5], 1
    %s284 = scalar_lea.sflag [#allocation5], 1
    %285 = vsyncpa %s284, 1

</llo_original>
